<compile_context>
chip_gen: v6e
topology: v6e:2x2x1
jax: 0.10.0
libtpu: 0.0.40
codegen_flags: <defaults>
</compile_context>

<pallas_src>
import jax
import jax.numpy as jnp
from jax.experimental import pallas as pl
from jax.experimental.pallas import tpu as pltpu


def _round_up(x, m):
    return ((x + m - 1) // m) * m


def _autoencoder_kernel(x_ref, w1_ref, b1_ref, w2_ref, b2_ref, out_ref):
    """decoder(encoder(x)) for one batch tile, fully fused.

    x is streamed in its native dtype and cast to bf16 in-kernel (VPU has
    slack under the MXU work); accumulation is f32.
    """
    # ---- encoder: Linear + ReLU ----
    x = x_ref[...].astype(jnp.bfloat16)
    h = jnp.dot(x, w1_ref[...], preferred_element_type=jnp.float32)
    h = jnp.maximum(h + b1_ref[...], 0.0)        # b1 is (1, H): broadcasts over rows

    # ---- decoder: Linear + Sigmoid ----
    y = jnp.dot(h.astype(jnp.bfloat16), w2_ref[...],
                preferred_element_type=jnp.float32)
    y = y + b2_ref[...]                          # b2 is (1, D)

    # sigmoid(y) = 0.5 * tanh(0.5 * y) + 0.5  -> single EUP transcendental
    # (vs. exp + reciprocal: halves EUP traffic, which is the hot slot for small H).
    out_ref[...] = (0.5 * jnp.tanh(0.5 * y) + 0.5).astype(out_ref.dtype)


def _choose_batch_tile(B, *, target_steps=8, min_tile=128, max_tile=512):
    """Pick a batch tile: ~target_steps grid steps, tile >= 128 rows, waste < 8 rows/tile."""
    bt = _round_up(pl.cdiv(B, target_steps), 8)
    bt = max(min_tile, bt)
    bt = min(bt, max_tile)
    bt = min(bt, _round_up(B, 8))   # never larger than the (8-padded) batch
    return max(8, bt)


def _vmem_limit_bytes(bt, Dp, Hp, x_itemsize, out_itemsize):
    """Computed VMEM budget: real footprint * margin, capped by the chip's capacity."""
    weights = 2 * Dp * Hp * 2                 # w1 + w2 bf16, single-buffered (Buffered(1))
    biases = (Hp + Dp) * 4                    # f32, single-buffered
    x_buf = 2 * bt * Dp * x_itemsize          # double-buffered input stream
    out_buf = 2 * bt * Dp * out_itemsize      # double-buffered output stream
    interm = bt * Hp * 4 + bt * Dp * 4        # f32 temporaries (h, y)
    footprint = weights + biases + x_buf + out_buf + interm

    cap = 64 * 1024 * 1024                    # conservative default (v7x per-core VMEM)
    try:
        info = pltpu.get_tpu_info()
        cap = int(info.vmem_capacity_bytes)
    except Exception:                         # host-side capability query only
        pass

    budget = int(cap * 0.85)                  # leave headroom for Mosaic internal scratch
    want = int(footprint * 1.5) + (4 << 20)
    return max(16 << 20, min(want, budget))


def _build_pallas_call(Bp, Dp, Hp, bt, out_dtype, vmem_limit):
    const = {"pipeline_mode": pl.Buffered(1)}   # weights & biases are grid-invariant
    grid = (Bp // bt,)
    return pl.pallas_call(
        _autoencoder_kernel,
        out_shape=jax.ShapeDtypeStruct((Bp, Dp), out_dtype),
        grid_spec=pltpu.PrefetchScalarGridSpec(
            num_scalar_prefetch=0,
            grid=grid,
            in_specs=[
                pl.BlockSpec((bt, Dp), lambda i: (i, 0)),            # x tile (streamed)
                pl.BlockSpec((Dp, Hp), lambda i: (0, 0), **const),   # w1 (resident)
                pl.BlockSpec((1, Hp), lambda i: (0, 0), **const),    # b1 (resident)
                pl.BlockSpec((Hp, Dp), lambda i: (0, 0), **const),   # w2 (resident)
                pl.BlockSpec((1, Dp), lambda i: (0, 0), **const),    # b2 (resident)
            ],
            out_specs=pl.BlockSpec((bt, Dp), lambda i: (i, 0)),
        ),
        compiler_params=pltpu.CompilerParams(
            dimension_semantics=("parallel",),
            vmem_limit_bytes=vmem_limit,
        ),
    )


def concat_autoencoder(x, w1, b1, w2, b2, *, out_dtype=None, target_steps=8):
    """Pallas implementation of decoder(encoder(x)).

    x  : [B, D]   activations (feature axis last -> 128-lane axis)
    w1 : [D, H]   encoder weight (transposed vs. PyTorch's [H, D])
    b1 : [H]      encoder bias
    w2 : [H, D]   decoder weight (transposed vs. PyTorch's [D, H])
    b2 : [D]      decoder bias
    out_dtype     output dtype (default: x.dtype; pass jnp.bfloat16 to halve writeback)
    """
    B, D = x.shape
    H = w1.shape[1]
    assert w1.shape == (D, H) and w2.shape == (H, D)
    assert b1.shape == (H,) and b2.shape == (D,)

    out_dtype = x.dtype if out_dtype is None else out_dtype

    # Feature dims padded to full lane width (128); batch padded to the tile.
    Dp = _round_up(D, 128)
    Hp = _round_up(H, 128)
    bt = _choose_batch_tile(B, target_steps=target_steps)
    Bp = _round_up(B, bt)

    # --- activations: only pad when actually needed; no wrapper-side dtype cast ---
    # Zero padding is exact: padded x cols / w1 rows contribute 0; padded hidden
    # units are ReLU(0)=0 and hit zero rows of w2; padded output cols/rows sliced off.
    if (Dp != D) or (Bp != B):
        x_in = jnp.zeros((Bp, Dp), x.dtype).at[:B, :D].set(x)
    else:
        x_in = x

    # --- weights to bf16 (MXU inputs), biases f32; pad only if unaligned ---
    if (Dp != D) or (Hp != H):
        w1_in = jnp.zeros((Dp, Hp), jnp.bfloat16).at[:D, :H].set(w1.astype(jnp.bfloat16))
        w2_in = jnp.zeros((Hp, Dp), jnp.bfloat16).at[:H, :D].set(w2.astype(jnp.bfloat16))
        b1_in = jnp.zeros((1, Hp), jnp.float32).at[0, :H].set(b1.astype(jnp.float32))
        b2_in = jnp.zeros((1, Dp), jnp.float32).at[0, :D].set(b2.astype(jnp.float32))
    else:
        w1_in = w1.astype(jnp.bfloat16)
        w2_in = w2.astype(jnp.bfloat16)
        b1_in = b1.astype(jnp.float32).reshape(1, H)
        b2_in = b2.astype(jnp.float32).reshape(1, D)

    vmem_limit = _vmem_limit_bytes(
        bt, Dp, Hp, x_in.dtype.itemsize, jnp.dtype(out_dtype).itemsize
    )

    out_p = _build_pallas_call(Bp, Dp, Hp, bt, out_dtype, vmem_limit)(
        x_in, w1_in, b1_in, w2_in, b2_in
    )

    if (Bp != B) or (Dp != D):
        out_p = out_p[:B, :D]
    return out_p


def _reference(x, w1, b1, w2, b2):
    h = jnp.maximum(x @ w1 + b1, 0.0)
    return jax.nn.sigmoid(h @ w2 + b2)


if __name__ == "__main__":
    # Small shapes consistent with an MLP autoencoder forward.
    # B=512 with bt=128 -> 4-step parallel grid (>=2 steps per v7x TensorCore).
    B, D, H = 512, 256, 64

    key = jax.random.PRNGKey(0)
    kx, kw1, kb1, kw2, kb2 = jax.random.split(key, 5)

    x = jax.random.normal(kx, (B, D), dtype=jnp.float32)
    # Deterministic "Kaiming-ish" init, purely synthetic.
    w1 = jax.random.normal(kw1, (D, H), dtype=jnp.float32) * (1.0 / jnp.sqrt(D))
    b1 = jax.random.normal(kb1, (H,), dtype=jnp.float32) * 0.01
    w2 = jax.random.normal(kw2, (H, D), dtype=jnp.float32) * (1.0 / jnp.sqrt(H))
    b2 = jax.random.normal(kb2, (D,), dtype=jnp.float32) * 0.01

    out = concat_autoencoder(x, w1, b1, w2, b2)
    out = jax.block_until_ready(out)

    ref = _reference(x, w1, b1, w2, b2)
    assert out.shape == (B, D)
    # bf16 MXU inputs with f32 accumulation -> relaxed tolerance vs. f32 reference.
    assert jnp.allclose(out, ref, atol=2e-2, rtol=2e-2), (
        "mismatch vs reference, max abs err = %s" % float(jnp.max(jnp.abs(out - ref)))
    )

    print("KERNEL_OK")
</pallas_src>

<mosaic_0001>
module attributes {stable_mosaic.version = 11 : i64} {
  func.func @_autoencoder_kernel(%arg0: i32, %arg1: memref<128x256xf32, #tpu.memory_space<vmem>>, %arg2: memref<256x128xbf16, #tpu.memory_space<vmem>>, %arg3: memref<1x128xf32, #tpu.memory_space<vmem>>, %arg4: memref<128x256xbf16, #tpu.memory_space<vmem>>, %arg5: memref<1x256xf32, #tpu.memory_space<vmem>>, %arg6: memref<128x256xf32, #tpu.memory_space<vmem>>) attributes {dimension_semantics = [#tpu.dimension_semantics<parallel>], iteration_bounds = array<i64: 4>, scalar_prefetch = 0 : i64, scratch_operands = 0 : i64, tpu.core_type = #tpu.core_type<tc>, window_params = [{transform_indices = @transform_0, window_bounds = array<i64: 128, 256>}, {pipeline_mode = #tpu.pipeline_mode<synchronous>, transform_indices = @transform_1, window_bounds = array<i64: 256, 128>}, {pipeline_mode = #tpu.pipeline_mode<synchronous>, transform_indices = @transform_2, window_bounds = array<i64: 1, 128>}, {pipeline_mode = #tpu.pipeline_mode<synchronous>, transform_indices = @transform_3, window_bounds = array<i64: 128, 256>}, {pipeline_mode = #tpu.pipeline_mode<synchronous>, transform_indices = @transform_4, window_bounds = array<i64: 1, 256>}, {transform_indices = @transform_5, window_bounds = array<i64: 128, 256>}]} {
    %c0 = arith.constant 0 : index
    %c0_0 = arith.constant 0 : index
    %0 = vector.load %arg1[%c0, %c0_0] : memref<128x256xf32, #tpu.memory_space<vmem>>, vector<128x256xf32>
    %1 = arith.truncf %0 : vector<128x256xf32> to vector<128x256xbf16>
    %c0_1 = arith.constant 0 : index
    %c0_2 = arith.constant 0 : index
    %2 = vector.load %arg2[%c0_1, %c0_2] : memref<256x128xbf16, #tpu.memory_space<vmem>>, vector<256x128xbf16>
    %cst = arith.constant dense<0.000000e+00> : vector<128x128xf32>
    %3 = tpu.matmul %1, %2, %cst {dimension_numbers = #tpu.dot_dimension_numbers<[1], [0], [0], [1], [0, 0, 1, 1], [], []>} : vector<128x256xbf16>, vector<256x128xbf16>, vector<128x128xf32> -> vector<128x128xf32>
    %c0_3 = arith.constant 0 : index
    %c0_4 = arith.constant 0 : index
    %4 = vector.load %arg3[%c0_3, %c0_4] : memref<1x128xf32, #tpu.memory_space<vmem>>, vector<1x128xf32>
    %5 = vector.broadcast %4 : vector<1x128xf32> to vector<128x128xf32>
    %6 = arith.addf %3, %5 : vector<128x128xf32>
    %cst_5 = arith.constant 0.000000e+00 : f32
    %7 = vector.broadcast %cst_5 : f32 to vector<128x128xf32>
    %8 = arith.maximumf %6, %7 : vector<128x128xf32>
    %9 = arith.truncf %8 : vector<128x128xf32> to vector<128x128xbf16>
    %c0_6 = arith.constant 0 : index
    %c0_7 = arith.constant 0 : index
    %10 = vector.load %arg4[%c0_6, %c0_7] : memref<128x256xbf16, #tpu.memory_space<vmem>>, vector<128x256xbf16>
    %cst_8 = arith.constant dense<0.000000e+00> : vector<128x256xf32>
    %11 = tpu.matmul %9, %10, %cst_8 {dimension_numbers = #tpu.dot_dimension_numbers<[1], [0], [0], [1], [0, 0, 1, 1], [], []>} : vector<128x128xbf16>, vector<128x256xbf16>, vector<128x256xf32> -> vector<128x256xf32>
    %c0_9 = arith.constant 0 : index
    %c0_10 = arith.constant 0 : index
    %12 = vector.load %arg5[%c0_9, %c0_10] : memref<1x256xf32, #tpu.memory_space<vmem>>, vector<1x256xf32>
    %13 = vector.broadcast %12 : vector<1x256xf32> to vector<128x256xf32>
    %14 = arith.addf %11, %13 : vector<128x256xf32>
    %cst_11 = arith.constant 5.000000e-01 : f32
    %15 = vector.broadcast %cst_11 : f32 to vector<128x256xf32>
    %16 = arith.mulf %15, %14 : vector<128x256xf32>
    %17 = math.tanh %16 : vector<128x256xf32>
    %cst_12 = arith.constant 5.000000e-01 : f32
    %18 = vector.broadcast %cst_12 : f32 to vector<128x256xf32>
    %19 = arith.mulf %18, %17 : vector<128x256xf32>
    %cst_13 = arith.constant 5.000000e-01 : f32
    %20 = vector.broadcast %cst_13 : f32 to vector<128x256xf32>
    %21 = arith.addf %19, %20 : vector<128x256xf32>
    %c0_14 = arith.constant 0 : index
    %c0_15 = arith.constant 0 : index
    %22 = vector.load %arg6[%c0_14, %c0_15] : memref<128x256xf32, #tpu.memory_space<vmem>>, vector<128x256xf32>
    tpu.vector_store %arg6[%c0_14, %c0_15], %21 {strides = array<i32>} : memref<128x256xf32, #tpu.memory_space<vmem>>, vector<128x256xf32>,
    return
  }
  func.func @transform_0(%arg0: i32) -> (i32, i32) {
    %c0_i32 = arith.constant 0 : i32
    %c0_i32_0 = arith.constant 0 : i32
    return %arg0, %c0_i32 : i32, i32
  }
  func.func @transform_1(%arg0: i32) -> (i32, i32) {
    %c0_i32 = arith.constant 0 : i32
    %c0_i32_0 = arith.constant 0 : i32
    %c0_i32_1 = arith.constant 0 : i32
    return %c0_i32, %c0_i32_0 : i32, i32
  }
  func.func @transform_2(%arg0: i32) -> (i32, i32) {
    %c0_i32 = arith.constant 0 : i32
    %c0_i32_0 = arith.constant 0 : i32
    %c0_i32_1 = arith.constant 0 : i32
    return %c0_i32, %c0_i32_0 : i32, i32
  }
  func.func @transform_3(%arg0: i32) -> (i32, i32) {
    %c0_i32 = arith.constant 0 : i32
    %c0_i32_0 = arith.constant 0 : i32
    %c0_i32_1 = arith.constant 0 : i32
    return %c0_i32, %c0_i32_0 : i32, i32
  }
  func.func @transform_4(%arg0: i32) -> (i32, i32) {
    %c0_i32 = arith.constant 0 : i32
    %c0_i32_0 = arith.constant 0 : i32
    %c0_i32_1 = arith.constant 0 : i32
    return %c0_i32, %c0_i32_0 : i32, i32
  }
  func.func @transform_5(%arg0: i32) -> (i32, i32) {
    %c0_i32 = arith.constant 0 : i32
    %c0_i32_0 = arith.constant 0 : i32
    return %arg0, %c0_i32 : i32, i32
  }
}

</mosaic_0001>

<llo_original>
// kernel: tpu_custom_call.1
$region0: #{tpu_custom_call.1}
  #allocation0 [shape = 'u32[]', space=smem, size = 0x4, offset = 0x4, fixed_abs, tag = 'smem constant byte address 0x4 - core index']
  #allocation1 [shape = 'u32[144,128]{1,0:T(1,128)}', space=vmem, size = 0x12000, scoped, tag = 'internal scratch']
  %s0 = inlined_call_operand.hbm [shape: f32[512,256], index: 0, kind: input, shape index: {}]
  %s1 = inlined_call_operand.hbm [shape: bf16[256,128], index: 1, kind: input, shape index: {}]
  %s2 = inlined_call_operand.vmem [shape: f32[1,128], index: 2, kind: input, shape index: {}]
  %s3 = inlined_call_operand.hbm [shape: bf16[128,256], index: 3, kind: input, shape index: {}]
  %s4 = inlined_call_operand.vmem [shape: f32[1,256], index: 4, kind: input, shape index: {}]
  %s5 = inlined_call_operand.hbm [shape: f32[512,256], index: 5, kind: output, shape index: {}]
  %s6 = sld [smem:[#allocation0]]
  $region65: #{tpu_custom_call.1} parent=0
    _
  %s8 = ssub.s32 1, %s6
  %s9 = scalar_select 0, %s8, %s6
  $region1: #{tpu_custom_call.1} parent=0
    #allocation2 [shape = 'u8[262144]{0}', space=vmem, size = 0x40000, scoped, tag = 'input window, operand 0']
    #allocation3 [shape = 's32[2]{0}', space=sflag, size = 0x8, scoped, tag = 'scoped memory for tpu_custom_call.1']
    #allocation4 [shape = 's32[2]{0}', space=sflag, size = 0x8, scoped, tag = 'scoped memory for tpu_custom_call.1']
    #allocation5 [shape = 'u8[65536]{0}', space=vmem, size = 0x10000, scoped, tag = 'input window, operand 1, single buffered']
    #allocation6 [shape = 's32[1]{0}', space=sflag, size = 0x4, scoped, tag = 'scoped memory for tpu_custom_call.1']
    #allocation7 [shape = 'u8[65536]{0}', space=vmem, size = 0x10000, scoped, tag = 'input window, operand 3, single buffered']
    #allocation8 [shape = 'u8[262144]{0}', space=vmem, size = 0x40000, scoped, tag = 'output window, operand 0']
    %10 = vsyncpa [#allocation3], 0
    %s11 = scalar_lea.sflag [#allocation3], 1
    %12 = vsyncpa %s11, 0
    %13 = vsyncpa [#allocation6], 0
    %14 = vsyncpa [#allocation4], 0
    %s15 = scalar_lea.sflag [#allocation4], 1
    %16 = vsyncpa %s15, 0
    loop: start=0, step=1, limit=6
    $region2: #{tpu_custom_call.1} parent=1 // loop_pre_header
      _
    $region3: #{tpu_custom_call.1} parent=1 // loop_header
      %s18 = sphi 0, %s22
      %p19 = scmp.ge.s32.totalorder %s18, 6
      %s28 = sphi 0, %s30
      %s31 = sphi 0, %s28
      %s32 = sphi 0, %s31
      %s48 = sphi 0, %s32
      %s52 = sphi 0, %s52
      %s54 = sphi 0, %s52
      %s55 = sphi 0, %s54
      %s69 = sphi 0, %s55
      %s73 = sphi 0, %s73
      %s75 = sphi 0, %s73
      %s76 = sphi 0, %s75
      %s90 = sphi 0, %s76
      %s94 = sphi 0, %s94
      %s96 = sphi 0, %s94
      %s97 = sphi 0, %s96
      %s111 = sphi 0, %s97
      %s115 = sphi 0, %s115
      %s117 = sphi 0, %s115
      %s118 = sphi 0, %s117
      %s132 = sphi 0, %s118
      %s138 = sphi 0, %s140
      %s141 = sphi 0, %s138
      %s142 = sphi 0, %s141
      %s158 = sphi 0, %s142
    $region4: #{tpu_custom_call.1} parent=1 // loop_header_branch
      %21 = sbr.rel (%p19) target = $region8
    $region5: #{tpu_custom_call.1} parent=1 // loop_body
      %s23 = ssub.s32 %s18, 1
      %s24 = ssub.s32 %s18, 2
      %s25 = sadd.s32 %s18, 1
      %s26 = ssub.s32 %s18, %s25
      %p27 = scmp.eq.s32.totalorder %s26, 0
      %s29 = sadd.s32 %s28, 1
      %s30 = scalar_select %p27, %s28, %s29
      %p33 = pneg %p27
      %p34 = scmp.eq.s32.totalorder %s18, 3
      %p35 = por %p33, %p34
      %p36 = scmp.ne.s32.totalorder %s28, %s31
      %p37 = scmp.eq.s32.totalorder %s18, 0
      %p38 = por %p36, %p37
      %p39 = scmp.ne.s32.totalorder %s28, %s31
      %p40 = scmp.eq.s32.totalorder %s23, 3
      %p41 = por %p39, %p40
      %p42 = scmp.ne.s32.totalorder %s31, %s32
      %p43 = scmp.eq.s32.totalorder %s23, 0
      %p44 = por %p42, %p43
      %p45 = scmp.ne.s32.totalorder %s31, %s32
      %p46 = scmp.eq.s32.totalorder %s24, 3
      %p47 = por %p45, %p46
      %p49 = scmp.ne.s32.totalorder %s32, %s48
      %p50 = scmp.eq.s32.totalorder %s24, 0
      %p51 = por %p49, %p50
      %s53 = sadd.s32 %s52, 1
      %p56 = scmp.eq.s32.totalorder %s18, 3
      %p57 = scmp.ne.s32.totalorder %s52, %s54
      %p58 = scmp.eq.s32.totalorder %s18, 0
      %p59 = por %p57, %p58
      %p60 = scmp.ne.s32.totalorder %s52, %s54
      %p61 = scmp.eq.s32.totalorder %s23, 3
      %p62 = por %p60, %p61
      %p63 = scmp.ne.s32.totalorder %s54, %s55
      %p64 = scmp.eq.s32.totalorder %s23, 0
      %p65 = por %p63, %p64
      %p66 = scmp.ne.s32.totalorder %s54, %s55
      %p67 = scmp.eq.s32.totalorder %s24, 3
      %p68 = por %p66, %p67
      %p70 = scmp.ne.s32.totalorder %s55, %s69
      %p71 = scmp.eq.s32.totalorder %s24, 0
      %p72 = por %p70, %p71
      %s74 = sadd.s32 %s73, 1
      %p77 = scmp.eq.s32.totalorder %s18, 3
      %p78 = scmp.ne.s32.totalorder %s73, %s75
      %p79 = scmp.eq.s32.totalorder %s18, 0
      %p80 = por %p78, %p79
      %p81 = scmp.ne.s32.totalorder %s73, %s75
      %p82 = scmp.eq.s32.totalorder %s23, 3
      %p83 = por %p81, %p82
      %p84 = scmp.ne.s32.totalorder %s75, %s76
      %p85 = scmp.eq.s32.totalorder %s23, 0
      %p86 = por %p84, %p85
      %p87 = scmp.ne.s32.totalorder %s75, %s76
      %p88 = scmp.eq.s32.totalorder %s24, 3
      %p89 = por %p87, %p88
      %p91 = scmp.ne.s32.totalorder %s76, %s90
      %p92 = scmp.eq.s32.totalorder %s24, 0
      %p93 = por %p91, %p92
      %s95 = sadd.s32 %s94, 1
      %p98 = scmp.eq.s32.totalorder %s18, 3
      %p99 = scmp.ne.s32.totalorder %s94, %s96
      %p100 = scmp.eq.s32.totalorder %s18, 0
      %p101 = por %p99, %p100
      %p102 = scmp.ne.s32.totalorder %s94, %s96
      %p103 = scmp.eq.s32.totalorder %s23, 3
      %p104 = por %p102, %p103
      %p105 = scmp.ne.s32.totalorder %s96, %s97
      %p106 = scmp.eq.s32.totalorder %s23, 0
      %p107 = por %p105, %p106
      %p108 = scmp.ne.s32.totalorder %s96, %s97
      %p109 = scmp.eq.s32.totalorder %s24, 3
      %p110 = por %p108, %p109
      %p112 = scmp.ne.s32.totalorder %s97, %s111
      %p113 = scmp.eq.s32.totalorder %s24, 0
      %p114 = por %p112, %p113
      %s116 = sadd.s32 %s115, 1
      %p119 = scmp.eq.s32.totalorder %s18, 3
      %p120 = scmp.ne.s32.totalorder %s115, %s117
      %p121 = scmp.eq.s32.totalorder %s18, 0
      %p122 = por %p120, %p121
      %p123 = scmp.ne.s32.totalorder %s115, %s117
      %p124 = scmp.eq.s32.totalorder %s23, 3
      %p125 = por %p123, %p124
      %p126 = scmp.ne.s32.totalorder %s117, %s118
      %p127 = scmp.eq.s32.totalorder %s23, 0
      %p128 = por %p126, %p127
      %p129 = scmp.ne.s32.totalorder %s117, %s118
      %p130 = scmp.eq.s32.totalorder %s24, 3
      %p131 = por %p129, %p130
      %p133 = scmp.ne.s32.totalorder %s118, %s132
      %p134 = scmp.eq.s32.totalorder %s24, 0
      %p135 = por %p133, %p134
      %s136 = ssub.s32 %s18, %s25
      %p137 = scmp.eq.s32.totalorder %s136, 0
      %s139 = sadd.s32 %s138, 1
      %s140 = scalar_select %p137, %s138, %s139
      %p143 = pneg %p137
      %p144 = scmp.eq.s32.totalorder %s18, 3
      %p145 = por %p143, %p144
      %p146 = scmp.ne.s32.totalorder %s138, %s141
      %p147 = scmp.eq.s32.totalorder %s18, 0
      %p148 = por %p146, %p147
      %p149 = scmp.ne.s32.totalorder %s138, %s141
      %p150 = scmp.eq.s32.totalorder %s23, 3
      %p151 = por %p149, %p150
      %p152 = scmp.ne.s32.totalorder %s141, %s142
      %p153 = scmp.eq.s32.totalorder %s23, 0
      %p154 = por %p152, %p153
      %p155 = scmp.ne.s32.totalorder %s141, %s142
      %p156 = scmp.eq.s32.totalorder %s24, 3
      %p157 = por %p155, %p156
      %p159 = scmp.ne.s32.totalorder %s142, %s158
      %p160 = scmp.eq.s32.totalorder %s24, 0
      %p161 = por %p159, %p160
      %p162 = scmp.le.s32.totalorder 1, %s18
      %p163 = scmp.lt.s32.totalorder %s18, 5
      %p164 = pnand %p162, %p163
      %p165 = pneg %p164
      // Predicated region
      $region9: #{tpu_custom_call.1} parent=5 // pred_check
        _
      $region10: #{tpu_custom_call.1} parent=5 // pred_check_branch
        %167 = sbr.rel (%p164) target = $region12
      $region11: #{tpu_custom_call.1} parent=5 // pred_region
        %s168 = ssub.s32 %s18, 1
        // Predicated region
        $region13: #{tpu_custom_call.1} parent=11 // pred_check
          %p169 = pneg %p65
        $region14: #{tpu_custom_call.1} parent=11 // pred_check_branch
          %171 = sbr.rel (%p169) target = $region16
        $region15: #{tpu_custom_call.1} parent=11 // pred_region
          %s173 = ssub.s32 2048, 2048
          %174 = vsyncadd [#allocation6], %s173
          %s175 = sshll.u32 [#allocation5], 4
          %s176 = int_to_ptr.vmem [resolvable:$true] %s175
          %181 = dma.hbm_to_vmem [thread:$0]  %s1, 2048, %s176, [#allocation6], 64, 64, 4
        $region16: #{tpu_custom_call.1} parent=11 // pred_fallthru
          _
        // Predicated region
        $region17: #{tpu_custom_call.1} parent=11 // pred_check
          %p182 = pneg %p86
        $region18: #{tpu_custom_call.1} parent=11 // pred_check_branch
          %184 = sbr.rel (%p182) target = $region20
        $region19: #{tpu_custom_call.1} parent=11 // pred_region
          _
        $region20: #{tpu_custom_call.1} parent=11 // pred_fallthru
          _
        // Predicated region
        $region21: #{tpu_custom_call.1} parent=11 // pred_check
          %p185 = pneg %p107
        $region22: #{tpu_custom_call.1} parent=11 // pred_check_branch
          %187 = sbr.rel (%p185) target = $region24
        $region23: #{tpu_custom_call.1} parent=11 // pred_region
          %s189 = ssub.s32 2048, 2048
          %190 = vsyncadd [#allocation6], %s189
          %s191 = sshll.u32 [#allocation7], 4
          %s192 = int_to_ptr.vmem [resolvable:$true] %s191
          %197 = dma.hbm_to_vmem [thread:$0]  %s3, 2048, %s192, [#allocation6], 128, 128, 8
        $region24: #{tpu_custom_call.1} parent=11 // pred_fallthru
          _
        // Predicated region
        $region25: #{tpu_custom_call.1} parent=11 // pred_check
          %p198 = pneg %p128
        $region26: #{tpu_custom_call.1} parent=11 // pred_check_branch
          %200 = sbr.rel (%p198) target = $region28
        $region27: #{tpu_custom_call.1} parent=11 // pred_region
          _
        $region28: #{tpu_custom_call.1} parent=11 // pred_fallthru
          _
      $region12: #{tpu_custom_call.1} parent=5 // pred_fallthru
        _
      %p201 = scmp.lt.s32.totalorder %s18, 4
      // Predicated region
      $region29: #{tpu_custom_call.1} parent=5 // pred_check
        %p202 = pneg %p201
      $region30: #{tpu_custom_call.1} parent=5 // pred_check_branch
        %204 = sbr.rel (%p202) target = $region32
      $region31: #{tpu_custom_call.1} parent=5 // pred_region
        // Predicated region
        $region33: #{tpu_custom_call.1} parent=31 // pred_check
          %p205 = pneg %p38
        $region34: #{tpu_custom_call.1} parent=31 // pred_check_branch
          %207 = sbr.rel (%p205) target = $region36
        $region35: #{tpu_custom_call.1} parent=31 // pred_region
          %s208 = sand.u32 %s28, 1
          %s209 = scalar_lea.sflag [#allocation3], %s208
          %s210 = sand.u32 %s28, 1
          %s211 = smul.addr %s210, 256
          %s212 = scalar_lea.vmem [#allocation2], %s211
          %s213 = smul.u32 16, %s18
          %s215 = ssub.s32 4096, 4096
          %216 = vsyncadd %s209, %s215
          %s217 = smul.addr %s213, 2
          %s218 = smul.addr %s217, 128
          %s219 = scalar_lea.hbm %s0, %s218
          %s220 = sshll.u32 %s212, 4
          %s221 = int_to_ptr.vmem [resolvable:$true] %s220
          %226 = dma.hbm_to_vmem [thread:$0]  %s219, 4096, %s221, %s209, 256, 256, 16
        $region36: #{tpu_custom_call.1} parent=31 // pred_fallthru
          _
      $region32: #{tpu_custom_call.1} parent=5 // pred_fallthru
        _
      %p227 = scmp.le.s32.totalorder 1, %s18
      %p228 = scmp.lt.s32.totalorder %s18, 5
      %p229 = pnand %p227, %p228
      %p230 = pneg %p229
      // Predicated region
      $region37: #{tpu_custom_call.1} parent=5 // pred_check
        _
      $region38: #{tpu_custom_call.1} parent=5 // pred_check_branch
        %232 = sbr.rel (%p229) target = $region40
      $region39: #{tpu_custom_call.1} parent=5 // pred_region
        %s233 = ssub.s32 %s18, 1
        %s234 = sand.u32 %s31, 1
        %s235 = scalar_lea.sflag [#allocation3], %s234
        %s236 = sand.u32 %s31, 1
        %s237 = smul.addr %s236, 256
        %s238 = scalar_lea.vmem [#allocation2], %s237
        // Predicated region
        $region41: #{tpu_custom_call.1} parent=39 // pred_check
          %p239 = pneg %p44
        $region42: #{tpu_custom_call.1} parent=39 // pred_check_branch
          %241 = sbr.rel (%p239) target = $region44
        $region43: #{tpu_custom_call.1} parent=39 // pred_region
          %242 = dma.done %s235, 4096
        $region44: #{tpu_custom_call.1} parent=39 // pred_fallthru
          _
        // Predicated region
        $region45: #{tpu_custom_call.1} parent=39 // pred_check
          %p243 = pneg %p65
        $region46: #{tpu_custom_call.1} parent=39 // pred_check_branch
          %245 = sbr.rel (%p243) target = $region48
        $region47: #{tpu_custom_call.1} parent=39 // pred_region
          %246 = dma.done [#allocation6], 2048
        $region48: #{tpu_custom_call.1} parent=39 // pred_fallthru
          _
        // Predicated region
        $region49: #{tpu_custom_call.1} parent=39 // pred_check
          %p247 = pneg %p107
        $region50: #{tpu_custom_call.1} parent=39 // pred_check_branch
          %249 = sbr.rel (%p247) target = $region52
        $region51: #{tpu_custom_call.1} parent=39 // pred_region
          %250 = dma.done [#allocation6], 2048
        $region52: #{tpu_custom_call.1} parent=39 // pred_fallthru
          _
        %s251 = sand.u32 %s31, 1
        %s252 = scalar_lea.sflag [#allocation3], %s251
        %s253 = sand.u32 %s31, 1
        %s254 = smul.addr %s253, 256
        %s255 = scalar_lea.vmem [#allocation2], %s254
        %p256 = pneg %p44
        %p257 = pneg %p41
        %p258 = pneg %p65
        %p259 = pneg %p62
        %p260 = pneg %p86
        %p261 = pneg %p83
        %p262 = pneg %p107
        %p263 = pneg %p104
        %p264 = pneg %p128
        %p265 = pneg %p125
        %p266 = pneg %p154
        %p267 = pneg %p151
        %s268 = sand.u32 %s141, 1
        %s269 = scalar_lea.sflag [#allocation4], %s268
        %s270 = sand.u32 %s141, 1
        %s271 = smul.addr %s270, 256
        %s272 = scalar_lea.vmem [#allocation8], %s271
        %s273 = smul.u32 16, %s23
        %s274 = smul.u32 16, %s23
        %v276 = vld [vmem:[%s238] sm:$0xff]
        %v277 = vld [vmem:[%s238 + $0x8] sm:$0xff]
        %v278 = vld [vmem:[%s238 + $0x10] sm:$0xff]
        %v279 = vld [vmem:[%s238 + $0x18] sm:$0xff]
        %v280 = vld [vmem:[%s238 + $0x20] sm:$0xff]
        %v281 = vld [vmem:[%s238 + $0x28] sm:$0xff]
        %v282 = vld [vmem:[%s238 + $0x30] sm:$0xff]
        %v283 = vld [vmem:[%s238 + $0x38] sm:$0xff]
        %v284 = vld [vmem:[%s238 + $0x40] sm:$0xff]
        %v285 = vld [vmem:[%s238 + $0x48] sm:$0xff]
        %v286 = vld [vmem:[%s238 + $0x50] sm:$0xff]
        %v287 = vld [vmem:[%s238 + $0x58] sm:$0xff]
        %v288 = vld [vmem:[%s238 + $0x60] sm:$0xff]
        %v289 = vld [vmem:[%s238 + $0x68] sm:$0xff]
        %v290 = vld [vmem:[%s238 + $0x70] sm:$0xff]
        %v291 = vld [vmem:[%s238 + $0x78] sm:$0xff]
        %v292 = vld [vmem:[%s238 + $0x80] sm:$0xff]
        %v293 = vld [vmem:[%s238 + $0x88] sm:$0xff]
        %v294 = vld [vmem:[%s238 + $0x90] sm:$0xff]
        %v295 = vld [vmem:[%s238 + $0x98] sm:$0xff]
        %v296 = vld [vmem:[%s238 + $0xa0] sm:$0xff]
        %v297 = vld [vmem:[%s238 + $0xa8] sm:$0xff]
        %v298 = vld [vmem:[%s238 + $0xb0] sm:$0xff]
        %v299 = vld [vmem:[%s238 + $0xb8] sm:$0xff]
        %v300 = vld [vmem:[%s238 + $0xc0] sm:$0xff]
        %v301 = vld [vmem:[%s238 + $0xc8] sm:$0xff]
        %v302 = vld [vmem:[%s238 + $0xd0] sm:$0xff]
        %v303 = vld [vmem:[%s238 + $0xd8] sm:$0xff]
        %v304 = vld [vmem:[%s238 + $0xe0] sm:$0xff]
        %v305 = vld [vmem:[%s238 + $0xe8] sm:$0xff]
        %v306 = vld [vmem:[%s238 + $0xf0] sm:$0xff]
        %v307 = vld [vmem:[%s238 + $0xf8] sm:$0xff]
        %v308 = vpack.c.bf16 %v278, %v276
        %v309 = vpack.c.bf16 %v279, %v277
        %v310 = vpack.c.bf16 %v282, %v280
        %v311 = vpack.c.bf16 %v283, %v281
        %v312 = vpack.c.bf16 %v286, %v284
        %v313 = vpack.c.bf16 %v287, %v285
        %v314 = vpack.c.bf16 %v290, %v288
        %v315 = vpack.c.bf16 %v291, %v289
        %v316 = vpack.c.bf16 %v294, %v292
        %v317 = vpack.c.bf16 %v295, %v293
        %v318 = vpack.c.bf16 %v298, %v296
        %v319 = vpack.c.bf16 %v299, %v297
        %v320 = vpack.c.bf16 %v302, %v300
        %v321 = vpack.c.bf16 %v303, %v301
        %v322 = vpack.c.bf16 %v306, %v304
        %v323 = vpack.c.bf16 %v307, %v305
        %v324 = vld [vmem:[#allocation5] sm:$0xf]
        %v325 = vld [vmem:[#allocation5 + $0x4] sm:$0xf]
        %v326 = vld [vmem:[#allocation5 + $0x8] sm:$0xf]
        %v327 = vld [vmem:[#allocation5 + $0xc] sm:$0xf]
        %v328 = vld [vmem:[#allocation5 + $0x10] sm:$0xf]
        %v329 = vld [vmem:[#allocation5 + $0x14] sm:$0xf]
        %v330 = vld [vmem:[#allocation5 + $0x18] sm:$0xf]
        %v331 = vld [vmem:[#allocation5 + $0x1c] sm:$0xf]
        %v332 = vld [vmem:[#allocation5 + $0x20] sm:$0xf]
        %v333 = vld [vmem:[#allocation5 + $0x24] sm:$0xf]
        %v334 = vld [vmem:[#allocation5 + $0x28] sm:$0xf]
        %v335 = vld [vmem:[#allocation5 + $0x2c] sm:$0xf]
        %v336 = vld [vmem:[#allocation5 + $0x30] sm:$0xf]
        %v337 = vld [vmem:[#allocation5 + $0x34] sm:$0xf]
        %v338 = vld [vmem:[#allocation5 + $0x38] sm:$0xf]
        %v339 = vld [vmem:[#allocation5 + $0x3c] sm:$0xf]
        %v340 = vld [vmem:[#allocation5 + $0x40] sm:$0xf]
        %v341 = vld [vmem:[#allocation5 + $0x44] sm:$0xf]
        %v342 = vld [vmem:[#allocation5 + $0x48] sm:$0xf]
        %v343 = vld [vmem:[#allocation5 + $0x4c] sm:$0xf]
        %v344 = vld [vmem:[#allocation5 + $0x50] sm:$0xf]
        %v345 = vld [vmem:[#allocation5 + $0x54] sm:$0xf]
        %v346 = vld [vmem:[#allocation5 + $0x58] sm:$0xf]
        %v347 = vld [vmem:[#allocation5 + $0x5c] sm:$0xf]
        %v348 = vld [vmem:[#allocation5 + $0x60] sm:$0xf]
        %v349 = vld [vmem:[#allocation5 + $0x64] sm:$0xf]
        %v350 = vld [vmem:[#allocation5 + $0x68] sm:$0xf]
        %v351 = vld [vmem:[#allocation5 + $0x6c] sm:$0xf]
        %v352 = vld [vmem:[#allocation5 + $0x70] sm:$0xf]
        %v353 = vld [vmem:[#allocation5 + $0x74] sm:$0xf]
        %v354 = vld [vmem:[#allocation5 + $0x78] sm:$0xf]
        %v355 = vld [vmem:[#allocation5 + $0x7c] sm:$0xf]
        %v356 = vld [vmem:[%s2] sm:$0x1]
        %v358 = vlaneseq
        %v359 = vshrl.u32 %v358, 7
        %v360 = vsub.s32 0, %v359
        %v361 = vrot.slane %v356, %v360
        %v395 = vunpack.c.l.b16 %v324
        %v396 = vunpack.c.l.b16 %v325
        %v397 = vunpack.c.l.b16 %v326
        %v398 = vunpack.c.l.b16 %v327
        %v399 = vunpack.c.l.b16 %v328
        %v400 = vunpack.c.l.b16 %v329
        %v401 = vunpack.c.l.b16 %v330
        %v402 = vunpack.c.l.b16 %v331
        %v403 = vunpack.c.l.b16 %v332
        %v404 = vunpack.c.l.b16 %v333
        %v405 = vunpack.c.l.b16 %v334
        %v406 = vunpack.c.l.b16 %v335
        %v407 = vunpack.c.l.b16 %v336
        %v408 = vunpack.c.l.b16 %v337
        %v409 = vunpack.c.l.b16 %v338
        %v410 = vunpack.c.l.b16 %v339
        %v411 = vunpack.c.l.b16 %v340
        %v412 = vunpack.c.l.b16 %v341
        %v413 = vunpack.c.l.b16 %v342
        %v414 = vunpack.c.l.b16 %v343
        %v415 = vunpack.c.l.b16 %v344
        %v416 = vunpack.c.l.b16 %v345
        %v417 = vunpack.c.l.b16 %v346
        %v418 = vunpack.c.l.b16 %v347
        %v419 = vunpack.c.l.b16 %v348
        %v420 = vunpack.c.l.b16 %v349
        %v421 = vunpack.c.l.b16 %v350
        %v422 = vunpack.c.l.b16 %v351
        %v423 = vunpack.c.l.b16 %v352
        %v424 = vunpack.c.l.b16 %v353
        %v425 = vunpack.c.l.b16 %v354
        %v426 = vunpack.c.l.b16 %v355
        %v427 = vpack.c.b16 %v396, %v395
        %v428 = vpack.c.b16 %v398, %v397
        %v429 = vpack.c.b16 %v400, %v399
        %v430 = vpack.c.b16 %v402, %v401
        %v431 = vpack.c.b16 %v404, %v403
        %v432 = vpack.c.b16 %v406, %v405
        %v433 = vpack.c.b16 %v408, %v407
        %v434 = vpack.c.b16 %v410, %v409
        %v435 = vpack.c.b16 %v412, %v411
        %v436 = vpack.c.b16 %v414, %v413
        %v437 = vpack.c.b16 %v416, %v415
        %v438 = vpack.c.b16 %v418, %v417
        %v439 = vpack.c.b16 %v420, %v419
        %v440 = vpack.c.b16 %v422, %v421
        %v441 = vpack.c.b16 %v424, %v423
        %v442 = vpack.c.b16 %v426, %v425
        %459 = vmatprep.subr.bf16.mxu0 0
        %460 = vmatpush1.bf16.msra.mxu0 %v434
        %461 = vmatprep.subr.bf16.mxu0 0
        %462 = vmatpush1.bf16.msra.mxu0 %v433
        %463 = vmatprep.subr.bf16.mxu0 0
        %464 = vmatpush1.bf16.msra.mxu0 %v432
        %465 = vmatprep.subr.bf16.mxu0 0
        %466 = vmatpush1.bf16.msra.mxu0 %v431
        %467 = vmatprep.subr.bf16.mxu0 0
        %468 = vmatpush1.bf16.msra.mxu0 %v430
        %469 = vmatprep.subr.bf16.mxu0 0
        %470 = vmatpush1.bf16.msra.mxu0 %v429
        %471 = vmatprep.subr.bf16.mxu0 0
        %472 = vmatpush1.bf16.msra.mxu0 %v428
        %473 = vmatprep.subr.bf16.mxu0 0
        %474 = vmatpush1.bf16.msra.mxu0 %v427
        %475 = vmatprep.subr.bf16.mxu0 0
        %476 = vmatpush2.bf16.msra.mxu0 %v442
        %477 = vmatprep.subr.bf16.mxu0 0
        %478 = vmatpush2.bf16.msra.mxu0 %v441
        %479 = vmatprep.subr.bf16.mxu0 0
        %480 = vmatpush2.bf16.msra.mxu0 %v440
        %481 = vmatprep.subr.bf16.mxu0 0
        %482 = vmatpush2.bf16.msra.mxu0 %v439
        %483 = vmatprep.subr.bf16.mxu0 0
        %484 = vmatpush2.bf16.msra.mxu0 %v438
        %485 = vmatprep.subr.bf16.mxu0 0
        %486 = vmatpush2.bf16.msra.mxu0 %v437
        %487 = vmatprep.subr.bf16.mxu0 0
        %488 = vmatpush2.bf16.msra.mxu0 %v436
        %489 = vmatprep.subr.bf16.mxu0 0
        %490 = vmatpush2.bf16.msra.mxu0 %v435
        %491 = vmatprep.mubr.bf16.mxu0 %v309
        %492 = vmatmul.mubr.bf16.gmra.mxu0 %v308
        %v493 = vpop.f32.mrf.mxu0
        %v494 = vadd.f32 %v361, %v493
        %v495 = vpop.f32.mrf.mxu0
        %v496 = vpop.f32.mrf.mxu0
        %v497 = vadd.f32 %v361, %v496
        %v498 = vpop.f32.mrf.mxu0
        %499 = vmatprep.mubr.bf16.mxu0 %v311
        %500 = vmatmul.mubr.bf16.gmra.mxu0 %v310
        %v501 = vpop.f32.mrf.mxu0
        %v502 = vadd.f32 %v361, %v501
        %v503 = vpop.f32.mrf.mxu0
        %v504 = vpop.f32.mrf.mxu0
        %v505 = vadd.f32 %v361, %v504
        %v506 = vpop.f32.mrf.mxu0
        %507 = vmatprep.mubr.bf16.mxu0 %v313
        %508 = vmatmul.mubr.bf16.gmra.mxu0 %v312
        %v509 = vpop.f32.mrf.mxu0
        %v510 = vadd.f32 %v361, %v509
        %v511 = vpop.f32.mrf.mxu0
        %v512 = vpop.f32.mrf.mxu0
        %v513 = vadd.f32 %v361, %v512
        %v514 = vpop.f32.mrf.mxu0
        %515 = vmatprep.mubr.bf16.mxu0 %v315
        %516 = vmatmul.mubr.bf16.gmra.mxu0 %v314
        %v517 = vpop.f32.mrf.mxu0
        %v518 = vadd.f32 %v361, %v517
        %v519 = vpop.f32.mrf.mxu0
        %v520 = vpop.f32.mrf.mxu0
        %v521 = vadd.f32 %v361, %v520
        %v522 = vpop.f32.mrf.mxu0
        %523 = vmatprep.mubr.bf16.mxu0 %v317
        %524 = vmatmul.mubr.bf16.gmra.mxu0 %v316
        %v525 = vpop.f32.mrf.mxu0
        %v526 = vadd.f32 %v361, %v525
        %v527 = vpop.f32.mrf.mxu0
        %v528 = vpop.f32.mrf.mxu0
        %v529 = vadd.f32 %v361, %v528
        %v530 = vpop.f32.mrf.mxu0
        %531 = vmatprep.mubr.bf16.mxu0 %v319
        %532 = vmatmul.mubr.bf16.gmra.mxu0 %v318
        %v533 = vpop.f32.mrf.mxu0
        %v534 = vadd.f32 %v361, %v533
        %v535 = vpop.f32.mrf.mxu0
        %v536 = vpop.f32.mrf.mxu0
        %v537 = vadd.f32 %v361, %v536
        %v538 = vpop.f32.mrf.mxu0
        %539 = vmatprep.mubr.bf16.mxu0 %v321
        %540 = vmatmul.mubr.bf16.gmra.mxu0 %v320
        %v541 = vpop.f32.mrf.mxu0
        %v542 = vadd.f32 %v361, %v541
        %v543 = vpop.f32.mrf.mxu0
        %v544 = vpop.f32.mrf.mxu0
        %v545 = vadd.f32 %v361, %v544
        %v546 = vpop.f32.mrf.mxu0
        %547 = vmatprep.mubr.bf16.mxu0 %v323
        %548 = vmatmul.mubr.bf16.gmra.mxu0 %v322
        %v549 = vpop.f32.mrf.mxu0
        %v550 = vadd.f32 %v361, %v549
        %v551 = vpop.f32.mrf.mxu0
        %v552 = vpop.f32.mrf.mxu0
        %v553 = vadd.f32 %v361, %v552
        %v554 = vpop.f32.mrf.mxu0
        %555 = vdwg.mxu0
        %v556 = vmax.f32 %v494, 0.0
        %v557 = vmax.f32 %v497, 0.0
        %v558 = vmax.f32 %v502, 0.0
        %v559 = vmax.f32 %v505, 0.0
        %v560 = vmax.f32 %v510, 0.0
        %v561 = vmax.f32 %v513, 0.0
        %v562 = vmax.f32 %v518, 0.0
        %v563 = vmax.f32 %v521, 0.0
        %v564 = vmax.f32 %v526, 0.0
        %v565 = vmax.f32 %v529, 0.0
        %v566 = vmax.f32 %v534, 0.0
        %v567 = vmax.f32 %v537, 0.0
        %v568 = vmax.f32 %v542, 0.0
        %v569 = vmax.f32 %v545, 0.0
        %v570 = vmax.f32 %v550, 0.0
        %v571 = vmax.f32 %v553, 0.0
        %v572 = vpack.c.bf16 %v557, %v556
        %v573 = vpack.c.bf16 %v559, %v558
        %v574 = vpack.c.bf16 %v561, %v560
        %v575 = vpack.c.bf16 %v563, %v562
        %v576 = vpack.c.bf16 %v565, %v564
        %v577 = vpack.c.bf16 %v567, %v566
        %v578 = vpack.c.bf16 %v569, %v568
        %v579 = vpack.c.bf16 %v571, %v570
        %v580 = vld [vmem:[#allocation7] sm:$0xff]
        %v581 = vld [vmem:[#allocation7 + $0x8] sm:$0xff]
        %v582 = vld [vmem:[#allocation7 + $0x10] sm:$0xff]
        %v583 = vld [vmem:[#allocation7 + $0x18] sm:$0xff]
        %v584 = vld [vmem:[#allocation7 + $0x20] sm:$0xff]
        %v585 = vld [vmem:[#allocation7 + $0x28] sm:$0xff]
        %v586 = vld [vmem:[#allocation7 + $0x30] sm:$0xff]
        %v587 = vld [vmem:[#allocation7 + $0x38] sm:$0xff]
        %v588 = vld [vmem:[#allocation7 + $0x40] sm:$0xff]
        %v589 = vld [vmem:[#allocation7 + $0x48] sm:$0xff]
        %v590 = vld [vmem:[#allocation7 + $0x50] sm:$0xff]
        %v591 = vld [vmem:[#allocation7 + $0x58] sm:$0xff]
        %v592 = vld [vmem:[#allocation7 + $0x60] sm:$0xff]
        %v593 = vld [vmem:[#allocation7 + $0x68] sm:$0xff]
        %v594 = vld [vmem:[#allocation7 + $0x70] sm:$0xff]
        %v595 = vld [vmem:[#allocation7 + $0x78] sm:$0xff]
        %v596 = vld [vmem:[%s4] sm:$0x3]
        %v598 = vlaneseq
        %v599 = vshrl.u32 %v598, 7
        %v600 = vsub.s32 0, %v599
        %v601 = vrot.slane %v596, %v600
        %v602 = vlaneseq
        %v603 = vshrl.u32 %v602, 7
        %v604 = vsub.s32 1, %v603
        %v605 = vrot.slane %v596, %v604
        %v624 = vunpack.c.l.b16 %v580
        %v625 = vunpack.c.h.b16 %v580
        %v626 = vunpack.c.l.b16 %v581
        %v627 = vunpack.c.h.b16 %v581
        %v628 = vunpack.c.l.b16 %v582
        %v629 = vunpack.c.h.b16 %v582
        %v630 = vunpack.c.l.b16 %v583
        %v631 = vunpack.c.h.b16 %v583
        %v632 = vunpack.c.l.b16 %v584
        %v633 = vunpack.c.h.b16 %v584
        %v634 = vunpack.c.l.b16 %v585
        %v635 = vunpack.c.h.b16 %v585
        %v636 = vunpack.c.l.b16 %v586
        %v637 = vunpack.c.h.b16 %v586
        %v638 = vunpack.c.l.b16 %v587
        %v639 = vunpack.c.h.b16 %v587
        %v640 = vunpack.c.l.b16 %v588
        %v641 = vunpack.c.h.b16 %v588
        %v642 = vunpack.c.l.b16 %v589
        %v643 = vunpack.c.h.b16 %v589
        %v644 = vunpack.c.l.b16 %v590
        %v645 = vunpack.c.h.b16 %v590
        %v646 = vunpack.c.l.b16 %v591
        %v647 = vunpack.c.h.b16 %v591
        %v648 = vunpack.c.l.b16 %v592
        %v649 = vunpack.c.h.b16 %v592
        %v650 = vunpack.c.l.b16 %v593
        %v651 = vunpack.c.h.b16 %v593
        %v652 = vunpack.c.l.b16 %v594
        %v653 = vunpack.c.h.b16 %v594
        %v654 = vunpack.c.l.b16 %v595
        %v655 = vunpack.c.h.b16 %v595
        %v656 = vpack.c.b16 %v626, %v624
        %v657 = vpack.c.b16 %v627, %v625
        %v658 = vpack.c.b16 %v630, %v628
        %v659 = vpack.c.b16 %v631, %v629
        %v660 = vpack.c.b16 %v634, %v632
        %v661 = vpack.c.b16 %v635, %v633
        %v662 = vpack.c.b16 %v638, %v636
        %v663 = vpack.c.b16 %v639, %v637
        %v664 = vpack.c.b16 %v642, %v640
        %v665 = vpack.c.b16 %v643, %v641
        %v666 = vpack.c.b16 %v646, %v644
        %v667 = vpack.c.b16 %v647, %v645
        %v668 = vpack.c.b16 %v650, %v648
        %v669 = vpack.c.b16 %v651, %v649
        %v670 = vpack.c.b16 %v654, %v652
        %v671 = vpack.c.b16 %v655, %v653
        %688 = vmatprep.subr.bf16.mxu0 %v671
        %689 = vmatpush1.bf16.msra.mxu0 %v670
        %690 = vmatprep.subr.bf16.mxu0 %v669
        %691 = vmatpush1.bf16.msra.mxu0 %v668
        %692 = vmatprep.subr.bf16.mxu0 %v667
        %693 = vmatpush1.bf16.msra.mxu0 %v666
        %694 = vmatprep.subr.bf16.mxu0 %v665
        %695 = vmatpush1.bf16.msra.mxu0 %v664
        %696 = vmatprep.subr.bf16.mxu0 %v663
        %697 = vmatpush1.bf16.msra.mxu0 %v662
        %698 = vmatprep.subr.bf16.mxu0 %v661
        %699 = vmatpush1.bf16.msra.mxu0 %v660
        %700 = vmatprep.subr.bf16.mxu0 %v659
        %701 = vmatpush1.bf16.msra.mxu0 %v658
        %702 = vmatprep.subr.bf16.mxu0 %v657
        %703 = vmatpush1.bf16.msra.mxu0 %v656
        %704 = vmatprep.subr.bf16.mxu0 0
        %705 = vmatpush2.bf16.msra.mxu0 0
        %706 = vmatprep.subr.bf16.mxu0 0
        %707 = vmatpush2.bf16.msra.mxu0 0
        %708 = vmatprep.subr.bf16.mxu0 0
        %709 = vmatpush2.bf16.msra.mxu0 0
        %710 = vmatprep.subr.bf16.mxu0 0
        %711 = vmatpush2.bf16.msra.mxu0 0
        %712 = vmatprep.subr.bf16.mxu0 0
        %713 = vmatpush2.bf16.msra.mxu0 0
        %714 = vmatprep.subr.bf16.mxu0 0
        %715 = vmatpush2.bf16.msra.mxu0 0
        %716 = vmatprep.subr.bf16.mxu0 0
        %717 = vmatpush2.bf16.msra.mxu0 0
        %718 = vmatprep.subr.bf16.mxu0 0
        %719 = vmatpush2.bf16.msra.mxu0 0
        %720 = vmatprep.mubr.bf16.mxu0 0
        %721 = vmatmul.mubr.bf16.gmra.mxu0 %v572
        %v722 = vpop.f32.mrf.mxu0
        %v723 = vadd.f32 %v601, %v722
        %v724 = vpop.f32.mrf.mxu0
        %v725 = vadd.f32 %v605, %v724
        %v726 = vpop.f32.mrf.mxu0
        %v727 = vadd.f32 %v601, %v726
        %v728 = vpop.f32.mrf.mxu0
        %v729 = vadd.f32 %v605, %v728
        %730 = vmatprep.mubr.bf16.mxu0 0
        %731 = vmatmul.mubr.bf16.gmra.mxu0 %v573
        %v732 = vpop.f32.mrf.mxu0
        %v733 = vadd.f32 %v601, %v732
        %v734 = vpop.f32.mrf.mxu0
        %v735 = vadd.f32 %v605, %v734
        %v736 = vpop.f32.mrf.mxu0
        %v737 = vadd.f32 %v601, %v736
        %v738 = vpop.f32.mrf.mxu0
        %v739 = vadd.f32 %v605, %v738
        %740 = vmatprep.mubr.bf16.mxu0 0
        %741 = vmatmul.mubr.bf16.gmra.mxu0 %v574
        %v742 = vpop.f32.mrf.mxu0
        %v743 = vadd.f32 %v601, %v742
        %v744 = vpop.f32.mrf.mxu0
        %v745 = vadd.f32 %v605, %v744
        %v746 = vpop.f32.mrf.mxu0
        %v747 = vadd.f32 %v601, %v746
        %v748 = vpop.f32.mrf.mxu0
        %v749 = vadd.f32 %v605, %v748
        %750 = vmatprep.mubr.bf16.mxu0 0
        %751 = vmatmul.mubr.bf16.gmra.mxu0 %v575
        %v752 = vpop.f32.mrf.mxu0
        %v753 = vadd.f32 %v601, %v752
        %v754 = vpop.f32.mrf.mxu0
        %v755 = vadd.f32 %v605, %v754
        %v756 = vpop.f32.mrf.mxu0
        %v757 = vadd.f32 %v601, %v756
        %v758 = vpop.f32.mrf.mxu0
        %v759 = vadd.f32 %v605, %v758
        %760 = vmatprep.mubr.bf16.mxu0 0
        %761 = vmatmul.mubr.bf16.gmra.mxu0 %v576
        %v762 = vpop.f32.mrf.mxu0
        %v763 = vadd.f32 %v601, %v762
        %v764 = vpop.f32.mrf.mxu0
        %v765 = vadd.f32 %v605, %v764
        %v766 = vpop.f32.mrf.mxu0
        %v767 = vadd.f32 %v601, %v766
        %v768 = vpop.f32.mrf.mxu0
        %v769 = vadd.f32 %v605, %v768
        %770 = vmatprep.mubr.bf16.mxu0 0
        %771 = vmatmul.mubr.bf16.gmra.mxu0 %v577
        %v772 = vpop.f32.mrf.mxu0
        %v773 = vadd.f32 %v601, %v772
        %v774 = vpop.f32.mrf.mxu0
        %v775 = vadd.f32 %v605, %v774
        %v776 = vpop.f32.mrf.mxu0
        %v777 = vadd.f32 %v601, %v776
        %v778 = vpop.f32.mrf.mxu0
        %v779 = vadd.f32 %v605, %v778
        %780 = vmatprep.mubr.bf16.mxu0 0
        %781 = vmatmul.mubr.bf16.gmra.mxu0 %v578
        %v782 = vpop.f32.mrf.mxu0
        %v783 = vadd.f32 %v601, %v782
        %v784 = vpop.f32.mrf.mxu0
        %v785 = vadd.f32 %v605, %v784
        %v786 = vpop.f32.mrf.mxu0
        %v787 = vadd.f32 %v601, %v786
        %v788 = vpop.f32.mrf.mxu0
        %v789 = vadd.f32 %v605, %v788
        %790 = vmatprep.mubr.bf16.mxu0 0
        %791 = vmatmul.mubr.bf16.gmra.mxu0 %v579
        %v792 = vpop.f32.mrf.mxu0
        %v793 = vadd.f32 %v601, %v792
        %v794 = vpop.f32.mrf.mxu0
        %v795 = vadd.f32 %v605, %v794
        %v796 = vpop.f32.mrf.mxu0
        %v797 = vadd.f32 %v601, %v796
        %v798 = vpop.f32.mrf.mxu0
        %v799 = vadd.f32 %v605, %v798
        %800 = vdwg.mxu0
        %v801 = vmul.f32 %v723, 0.5
        %v802 = vmul.f32 %v725, 0.5
        %v803 = vmul.f32 %v727, 0.5
        %v804 = vmul.f32 %v729, 0.5
        %v805 = vmul.f32 %v733, 0.5
        %v806 = vmul.f32 %v735, 0.5
        %v807 = vmul.f32 %v737, 0.5
        %v808 = vmul.f32 %v739, 0.5
        %v809 = vmul.f32 %v743, 0.5
        %v810 = vmul.f32 %v745, 0.5
        %v811 = vmul.f32 %v747, 0.5
        %v812 = vmul.f32 %v749, 0.5
        %v813 = vmul.f32 %v753, 0.5
        %v814 = vmul.f32 %v755, 0.5
        %v815 = vmul.f32 %v757, 0.5
        %v816 = vmul.f32 %v759, 0.5
        %v817 = vmul.f32 %v763, 0.5
        %v818 = vmul.f32 %v765, 0.5
        %v819 = vmul.f32 %v767, 0.5
        %v820 = vmul.f32 %v769, 0.5
        %v821 = vmul.f32 %v773, 0.5
        %v822 = vmul.f32 %v775, 0.5
        %v823 = vmul.f32 %v777, 0.5
        %v824 = vmul.f32 %v779, 0.5
        %v825 = vmul.f32 %v783, 0.5
        %v826 = vmul.f32 %v785, 0.5
        %v827 = vmul.f32 %v787, 0.5
        %v828 = vmul.f32 %v789, 0.5
        %v829 = vmul.f32 %v793, 0.5
        %v830 = vmul.f32 %v795, 0.5
        %v831 = vmul.f32 %v797, 0.5
        %v832 = vmul.f32 %v799, 0.5
        %v833 = vtanh.pop %v801
        %v834 = vtanh.pop %v802
        %v835 = vtanh.pop %v803
        %v836 = vtanh.pop %v804
        %v837 = vtanh.pop %v805
        %v838 = vtanh.pop %v806
        %v839 = vtanh.pop %v807
        %v840 = vtanh.pop %v808
        %v841 = vtanh.pop %v809
        %v842 = vtanh.pop %v810
        %v843 = vtanh.pop %v811
        %v844 = vtanh.pop %v812
        %v845 = vtanh.pop %v813
        %v846 = vtanh.pop %v814
        %v847 = vtanh.pop %v815
        %v848 = vtanh.pop %v816
        %v849 = vtanh.pop %v817
        %v850 = vtanh.pop %v818
        %v851 = vtanh.pop %v819
        %v852 = vtanh.pop %v820
        %v853 = vtanh.pop %v821
        %v854 = vtanh.pop %v822
        %v855 = vtanh.pop %v823
        %v856 = vtanh.pop %v824
        %v857 = vtanh.pop %v825
        %v858 = vtanh.pop %v826
        %v859 = vtanh.pop %v827
        %v860 = vtanh.pop %v828
        %v861 = vtanh.pop %v829
        %v862 = vtanh.pop %v830
        %v863 = vtanh.pop %v831
        %v864 = vtanh.pop %v832
        %v865 = vmul.f32 %v833, 0.5
        %v866 = vmul.f32 %v834, 0.5
        %v867 = vmul.f32 %v835, 0.5
        %v868 = vmul.f32 %v836, 0.5
        %v869 = vmul.f32 %v837, 0.5
        %v870 = vmul.f32 %v838, 0.5
        %v871 = vmul.f32 %v839, 0.5
        %v872 = vmul.f32 %v840, 0.5
        %v873 = vmul.f32 %v841, 0.5
        %v874 = vmul.f32 %v842, 0.5
        %v875 = vmul.f32 %v843, 0.5
        %v876 = vmul.f32 %v844, 0.5
        %v877 = vmul.f32 %v845, 0.5
        %v878 = vmul.f32 %v846, 0.5
        %v879 = vmul.f32 %v847, 0.5
        %v880 = vmul.f32 %v848, 0.5
        %v881 = vmul.f32 %v849, 0.5
        %v882 = vmul.f32 %v850, 0.5
        %v883 = vmul.f32 %v851, 0.5
        %v884 = vmul.f32 %v852, 0.5
        %v885 = vmul.f32 %v853, 0.5
        %v886 = vmul.f32 %v854, 0.5
        %v887 = vmul.f32 %v855, 0.5
        %v888 = vmul.f32 %v856, 0.5
        %v889 = vmul.f32 %v857, 0.5
        %v890 = vmul.f32 %v858, 0.5
        %v891 = vmul.f32 %v859, 0.5
        %v892 = vmul.f32 %v860, 0.5
        %v893 = vmul.f32 %v861, 0.5
        %v894 = vmul.f32 %v862, 0.5
        %v895 = vmul.f32 %v863, 0.5
        %v896 = vmul.f32 %v864, 0.5
        %v897 = vadd.f32 %v865, 0.5
        %v898 = vadd.f32 %v866, 0.5
        %v899 = vadd.f32 %v867, 0.5
        %v900 = vadd.f32 %v868, 0.5
        %v901 = vadd.f32 %v869, 0.5
        %v902 = vadd.f32 %v870, 0.5
        %v903 = vadd.f32 %v871, 0.5
        %v904 = vadd.f32 %v872, 0.5
        %v905 = vadd.f32 %v873, 0.5
        %v906 = vadd.f32 %v874, 0.5
        %v907 = vadd.f32 %v875, 0.5
        %v908 = vadd.f32 %v876, 0.5
        %v909 = vadd.f32 %v877, 0.5
        %v910 = vadd.f32 %v878, 0.5
        %v911 = vadd.f32 %v879, 0.5
        %v912 = vadd.f32 %v880, 0.5
        %v913 = vadd.f32 %v881, 0.5
        %v914 = vadd.f32 %v882, 0.5
        %v915 = vadd.f32 %v883, 0.5
        %v916 = vadd.f32 %v884, 0.5
        %v917 = vadd.f32 %v885, 0.5
        %v918 = vadd.f32 %v886, 0.5
        %v919 = vadd.f32 %v887, 0.5
        %v920 = vadd.f32 %v888, 0.5
        %v921 = vadd.f32 %v889, 0.5
        %v922 = vadd.f32 %v890, 0.5
        %v923 = vadd.f32 %v891, 0.5
        %v924 = vadd.f32 %v892, 0.5
        %v925 = vadd.f32 %v893, 0.5
        %v926 = vadd.f32 %v894, 0.5
        %v927 = vadd.f32 %v895, 0.5
        %v928 = vadd.f32 %v896, 0.5
        %929 = vst [vmem:[%s272] sm:$0xff] %v897
        %930 = vst [vmem:[%s272 + $0x8] sm:$0xff] %v898
        %931 = vst [vmem:[%s272 + $0x10] sm:$0xff] %v899
        %932 = vst [vmem:[%s272 + $0x18] sm:$0xff] %v900
        %933 = vst [vmem:[%s272 + $0x20] sm:$0xff] %v901
        %934 = vst [vmem:[%s272 + $0x28] sm:$0xff] %v902
        %935 = vst [vmem:[%s272 + $0x30] sm:$0xff] %v903
        %936 = vst [vmem:[%s272 + $0x38] sm:$0xff] %v904
        %937 = vst [vmem:[%s272 + $0x40] sm:$0xff] %v905
        %938 = vst [vmem:[%s272 + $0x48] sm:$0xff] %v906
        %939 = vst [vmem:[%s272 + $0x50] sm:$0xff] %v907
        %940 = vst [vmem:[%s272 + $0x58] sm:$0xff] %v908
        %941 = vst [vmem:[%s272 + $0x60] sm:$0xff] %v909
        %942 = vst [vmem:[%s272 + $0x68] sm:$0xff] %v910
        %943 = vst [vmem:[%s272 + $0x70] sm:$0xff] %v911
        %944 = vst [vmem:[%s272 + $0x78] sm:$0xff] %v912
        %945 = vst [vmem:[%s272 + $0x80] sm:$0xff] %v913
        %946 = vst [vmem:[%s272 + $0x88] sm:$0xff] %v914
        %947 = vst [vmem:[%s272 + $0x90] sm:$0xff] %v915
        %948 = vst [vmem:[%s272 + $0x98] sm:$0xff] %v916
        %949 = vst [vmem:[%s272 + $0xa0] sm:$0xff] %v917
        %950 = vst [vmem:[%s272 + $0xa8] sm:$0xff] %v918
        %951 = vst [vmem:[%s272 + $0xb0] sm:$0xff] %v919
        %952 = vst [vmem:[%s272 + $0xb8] sm:$0xff] %v920
        %953 = vst [vmem:[%s272 + $0xc0] sm:$0xff] %v921
        %954 = vst [vmem:[%s272 + $0xc8] sm:$0xff] %v922
        %955 = vst [vmem:[%s272 + $0xd0] sm:$0xff] %v923
        %956 = vst [vmem:[%s272 + $0xd8] sm:$0xff] %v924
        %957 = vst [vmem:[%s272 + $0xe0] sm:$0xff] %v925
        %958 = vst [vmem:[%s272 + $0xe8] sm:$0xff] %v926
        %959 = vst [vmem:[%s272 + $0xf0] sm:$0xff] %v927
        %960 = vst [vmem:[%s272 + $0xf8] sm:$0xff] %v928
        %s961 = sand.u32 %s141, 1
        %s962 = scalar_lea.sflag [#allocation4], %s961
        %s963 = sand.u32 %s141, 1
        %s964 = smul.addr %s963, 256
        %s965 = scalar_lea.vmem [#allocation8], %s964
        // Predicated region
        $region53: #{tpu_custom_call.1} parent=39 // pred_check
          %p966 = pneg %p151
        $region54: #{tpu_custom_call.1} parent=39 // pred_check_branch
          %968 = sbr.rel (%p966) target = $region56
        $region55: #{tpu_custom_call.1} parent=39 // pred_region
          %s969 = smul.u32 16, %s23
          %s971 = ssub.s32 4096, 4096
          %972 = vsyncadd %s962, %s971
          %s973 = smul.addr %s969, 2
          %s974 = smul.addr %s973, 128
          %s975 = scalar_lea.hbm %s5, %s974
          %s976 = sshll.u32 %s965, 4
          %s977 = int_to_ptr.vmem [resolvable:$true] %s976
          %982 = dma.vmem_to_hbm [thread:$0]  %s977, 4096, %s975, %s962, 256, 256, 16
        $region56: #{tpu_custom_call.1} parent=39 // pred_fallthru
          _
      $region40: #{tpu_custom_call.1} parent=5 // pred_fallthru
        _
      %p983 = scmp.le.s32.totalorder 2, %s18
      // Predicated region
      $region57: #{tpu_custom_call.1} parent=5 // pred_check
        %p984 = pneg %p983
      $region58: #{tpu_custom_call.1} parent=5 // pred_check_branch
        %986 = sbr.rel (%p984) target = $region60
      $region59: #{tpu_custom_call.1} parent=5 // pred_region
        %s987 = ssub.s32 %s18, 2
        // Predicated region
        $region61: #{tpu_custom_call.1} parent=59 // pred_check
          %p988 = pneg %p157
        $region62: #{tpu_custom_call.1} parent=59 // pred_check_branch
          %990 = sbr.rel (%p988) target = $region64
        $region63: #{tpu_custom_call.1} parent=59 // pred_region
          %s991 = sand.u32 %s142, 1
          %s992 = scalar_lea.sflag [#allocation4], %s991
          %s993 = sand.u32 %s142, 1
          %s994 = smul.addr %s993, 256
          %s995 = scalar_lea.vmem [#allocation8], %s994
          %996 = dma.done %s992, 4096
        $region64: #{tpu_custom_call.1} parent=59 // pred_fallthru
          _
      $region60: #{tpu_custom_call.1} parent=5 // pred_fallthru
        _
    $region6: #{tpu_custom_call.1} parent=1 // loop_footer
      %s22 = sadd.s32 1, %s18
    $region7: #{tpu_custom_call.1} parent=1 // loop_footer_branch
      %17 = sbr.rel target = $region3
    $region8: #{tpu_custom_call.1} parent=1 // loop_exit
      _
    %997 = vsyncpa [#allocation3], 1
    %s998 = scalar_lea.sflag [#allocation3], 1
    %999 = vsyncpa %s998, 1
    %1000 = vsyncpa [#allocation6], 1
    %1001 = vsyncpa [#allocation4], 1
    %s1002 = scalar_lea.sflag [#allocation4], 1
    %1003 = vsyncpa %s1002, 1

</llo_original>
